<compile_context>
chip_gen: v7x
topology: tpu7x:2x2x1
jax: 0.10.0
libtpu: 0.0.40
codegen_flags: <defaults>
</compile_context>

<pallas_src>
import jax
import jax.numpy as jnp
from jax.experimental import pallas as pl
from jax.experimental.pallas import tpu as pltpu


def _tanh_kernel(x_ref, o_ref):
    # Elementwise hot path: tanh on the whole VMEM tile (EUP), hidden under DMA.
    o_ref[...] = jnp.tanh(x_ref[...])


_LANE_CANDIDATES = (2048, 1024, 512, 256, 128)


def _choose_lane_width(n: int):
    """Widest lane count in {2048..128} dividing n, or None if none divides."""
    for cand in _LANE_CANDIDATES:
        if n % cand == 0:
            return cand
    return None


def stochastic_tanh(
    x: jax.Array,
    *,
    block_bytes: int = 4 * 1024 * 1024,
    min_pallas_bytes: int = 512 * 1024,
) -> jax.Array:
    """Pallas implementation of StochasticTanH.forward (== tanh(x)).

    Flattens to a lane-dense [R, C] slab (C a large multiple of 128), tiles
    rows so each block is ~block_bytes, and applies tanh per block.
    """
    # TODO(synk): the module name says "Stochastic" but the reference forward is
    # a plain deterministic tanh; any stochastic behavior is not part of
    # forward() and is not implemented here.
    orig_shape = x.shape
    dtype = x.dtype
    n = int(x.size)
    if n == 0:
        return x
    itemsize = jnp.dtype(dtype).itemsize

    # Tiny-input bypass: pallas_call launch + pipeline priming (us-scale)
    # dominates; XLA's fused tanh is already at roofline here.
    if n * itemsize < min_pallas_bytes:
        return jnp.tanh(x)

    lanes = _choose_lane_width(n)
    if lanes is None:
        # Non-128-aligned element count (rare for NN activations): padding +
        # slicing around the kernel would add two extra full HBM passes
        # (~3x traffic) to a purely memory-bound op, so use XLA's fused tanh
        # (exactly 1 read + 1 write) instead.
        return jnp.tanh(x)

    R = n // lanes
    slab = x.reshape(R, lanes)  # contiguous reshape: free, no copy

    # Rows per block: ~block_bytes, rounded down to the dtype-native sublane
    # multiple (f32:8, bf16:16, int8/fp8:32), at least one sublane tile,
    # clamped to the full row extent (full-extent block is always legal).
    sub = {4: 8, 2: 16, 1: 32}.get(itemsize, 8)
    bytes_per_row = lanes * itemsize
    tile_rows = max(sub, (block_bytes // bytes_per_row) // sub * sub)
    tile_rows = min(tile_rows, R)

    grid = (pl.cdiv(R, tile_rows),)  # ragged final row-block is masked by Pallas

    out_slab = pl.pallas_call(
        _tanh_kernel,
        out_shape=jax.ShapeDtypeStruct((R, lanes), dtype),
        grid=grid,
        in_specs=[pl.BlockSpec((tile_rows, lanes), lambda i: (i, 0))],
        out_specs=pl.BlockSpec((tile_rows, lanes), lambda i: (i, 0)),
        compiler_params=pltpu.CompilerParams(
            # "parallel" lets the grid axis shard across the 2 TCs on v7x;
            # no-op on single-TC v5e/v6e.
            dimension_semantics=("parallel",),
            # 4 MiB blocks x 2 buffers x (in+out) = 16 MiB; 40 MiB gives
            # headroom everywhere (<= 64 MiB physical on v7x, 128 on v5e/v6e)
            # and avoids the v5e 16 MiB scoped-VMEM default ceiling.
            vmem_limit_bytes=40 * 1024 * 1024,
        ),
        cost_estimate=pl.CostEstimate(
            flops=0,
            transcendentals=R * lanes,
            bytes_accessed=2 * R * lanes * itemsize,
        ),
    )(slab)

    return out_slab.reshape(orig_shape)


if __name__ == "__main__":
    key = jax.random.PRNGKey(0)

    # Headline small shape (NCHW conv-style activation): batch=2, ch=4, 16x16.
    x = jax.random.normal(key, (2, 4, 16, 16), dtype=jnp.float32)
    ref = jnp.tanh(x)

    # Default path (tiny input -> roofline bypass); same forward semantics.
    y = jax.block_until_ready(stochastic_tanh(x))
    assert y.shape == x.shape and y.dtype == x.dtype
    assert jnp.max(jnp.abs(y - ref)) < 1e-6

    # Force the Pallas path on the same small shape (single block, R == 1).
    y_pallas = jax.block_until_ready(stochastic_tanh(x, min_pallas_bytes=0))
    assert y_pallas.shape == x.shape and y_pallas.dtype == x.dtype
    assert jnp.max(jnp.abs(y_pallas - ref)) < 1e-6

    # Multi-block Pallas path with a ragged final row-block:
    # n = 344064 -> slab (168, 2048); block_bytes=256 KiB -> tile_rows=32,
    # grid=6, last block has only 8 valid rows (masked by Pallas).
    x2 = jax.random.normal(jax.random.PRNGKey(1), (21, 16, 32, 32), dtype=jnp.float32)
    y2 = jax.block_until_ready(
        stochastic_tanh(x2, block_bytes=256 * 1024, min_pallas_bytes=0))
    assert jnp.max(jnp.abs(y2 - jnp.tanh(x2))) < 1e-6

    # Non-128-aligned element count -> single-pass jnp.tanh fallback.
    x3 = jax.random.normal(jax.random.PRNGKey(2), (3, 5, 7, 11), dtype=jnp.float32)
    y3 = jax.block_until_ready(stochastic_tanh(x3))
    assert jnp.max(jnp.abs(y3 - jnp.tanh(x3))) < 1e-6

    print("KERNEL_OK")
</pallas_src>

<mosaic_0001>
module attributes {stable_mosaic.version = 11 : i64} {
  func.func @_tanh_kernel(%arg0: i32, %arg1: memref<1x2048xf32, #tpu.memory_space<vmem>>, %arg2: memref<1x2048xf32, #tpu.memory_space<vmem>>) attributes {dimension_semantics = [#tpu.dimension_semantics<parallel>], iteration_bounds = array<i64: 1>, scalar_prefetch = 0 : i64, scratch_operands = 0 : i64, tpu.core_type = #tpu.core_type<tc>, window_params = [{transform_indices = @transform_0, window_bounds = array<i64: 1, 2048>}, {transform_indices = @transform_1, window_bounds = array<i64: 1, 2048>}]} {
    %c0 = arith.constant 0 : index
    %c0_0 = arith.constant 0 : index
    %0 = vector.load %arg1[%c0, %c0_0] : memref<1x2048xf32, #tpu.memory_space<vmem>>, vector<1x2048xf32>
    %1 = math.tanh %0 : vector<1x2048xf32>
    %c0_1 = arith.constant 0 : index
    %c0_2 = arith.constant 0 : index
    %2 = vector.load %arg2[%c0_1, %c0_2] : memref<1x2048xf32, #tpu.memory_space<vmem>>, vector<1x2048xf32>
    tpu.vector_store %arg2[%c0_1, %c0_2], %1 {strides = array<i32>} : memref<1x2048xf32, #tpu.memory_space<vmem>>, vector<1x2048xf32>,
    return
  }
  func.func @transform_0(%arg0: i32) -> (i32, i32) {
    %c0_i32 = arith.constant 0 : i32
    %c0_i32_0 = arith.constant 0 : i32
    return %arg0, %c0_i32 : i32, i32
  }
  func.func @transform_1(%arg0: i32) -> (i32, i32) {
    %c0_i32 = arith.constant 0 : i32
    %c0_i32_0 = arith.constant 0 : i32
    return %arg0, %c0_i32 : i32, i32
  }
}

</mosaic_0001>

<llo_original>
// kernel: tpu_custom_call.1
$region0: #{tpu_custom_call.1}
  #allocation0 [shape = 'u32[]', space=smem, size = 0x4, offset = 0x4, fixed_abs, tag = 'smem constant byte address 0x4 - core index']
  #allocation1 [shape = 'u32[144,128]{1,0:T(1,128)}', space=vmem, size = 0x12000, scoped, tag = 'internal scratch']
  %s0 = inlined_call_operand.hbm [shape: f32[1,2048], index: 0, kind: input, shape index: {}]
  %s1 = inlined_call_operand.hbm [shape: f32[1,2048], index: 1, kind: output, shape index: {}]
  %s2 = sld [smem:[#allocation0]]
  $region18: #{tpu_custom_call.1} parent=0
    _
  %s4 = ssub.s32 1, %s2
  %s5 = scalar_select 0, %s4, %s2
  $region1: #{tpu_custom_call.1} parent=0
    #allocation2 [shape = 'u8[8192]{0}', space=vmem, size = 0x2000, scoped, tag = 'input window, operand 0, single buffered']
    #allocation3 [shape = 's32[1]{0}', space=sflag, size = 0x4, scoped, tag = 'scoped memory for tpu_custom_call.1']
    #allocation4 [shape = 's32[1]{0}', space=sflag, size = 0x4, scoped, tag = 'scoped memory for tpu_custom_call.1']
    #allocation5 [shape = 'u8[8192]{0}', space=vmem, size = 0x2000, scoped, tag = 'output window, operand 0, single buffered']
    %6 = vsyncpa [#allocation3], 0
    %7 = vsyncpa [#allocation4], 0
    // Predicated region
    $region2: #{tpu_custom_call.1} parent=1 // pred_check
      _
    $region3: #{tpu_custom_call.1} parent=1 // pred_check_branch
      %9 = sbr.rel (0) target = $region5
    $region4: #{tpu_custom_call.1} parent=1 // pred_region
      %s11 = ssub.s32 256, 256
      %12 = vsyncadd [#allocation3], %s11
      %s14 = sshll.u32 [#allocation2], 4
      %s15 = int_to_ptr.vmem [resolvable:$true] %s14
      %17 = dma.hbm_to_vmem [thread:$0]  %s0, 256, %s15, [#allocation3]
    $region5: #{tpu_custom_call.1} parent=1 // pred_fallthru
      _
    // Predicated region
    $region6: #{tpu_custom_call.1} parent=1 // pred_check
      _
    $region7: #{tpu_custom_call.1} parent=1 // pred_check_branch
      %19 = sbr.rel (0) target = $region9
    $region8: #{tpu_custom_call.1} parent=1 // pred_region
      %20 = dma.done [#allocation3], 256
    $region9: #{tpu_custom_call.1} parent=1 // pred_fallthru
      _
    %v21 = vld [vmem:[#allocation2] sm:$0xff]
    %v22 = vld [vmem:[#allocation2 + $0x8] sm:$0xff]
    %v23 = vtanh.pop %v21
    %v24 = vtanh.pop %v22
    %25 = vst [vmem:[#allocation5] sm:$0xff] %v23
    %26 = vst [vmem:[#allocation5 + $0x8] sm:$0xff] %v24
    // Predicated region
    $region10: #{tpu_custom_call.1} parent=1 // pred_check
      _
    $region11: #{tpu_custom_call.1} parent=1 // pred_check_branch
      %28 = sbr.rel (0) target = $region13
    $region12: #{tpu_custom_call.1} parent=1 // pred_region
      %s30 = ssub.s32 256, 256
      %31 = vsyncadd [#allocation4], %s30
      %s33 = sshll.u32 [#allocation5], 4
      %s34 = int_to_ptr.vmem [resolvable:$true] %s33
      %36 = dma.vmem_to_hbm [thread:$0]  %s34, 256, %s1, [#allocation4]
    $region13: #{tpu_custom_call.1} parent=1 // pred_fallthru
      _
    // Predicated region
    $region14: #{tpu_custom_call.1} parent=1 // pred_check
      _
    $region15: #{tpu_custom_call.1} parent=1 // pred_check_branch
      %38 = sbr.rel (0) target = $region17
    $region16: #{tpu_custom_call.1} parent=1 // pred_region
      %39 = dma.done [#allocation4], 256
    $region17: #{tpu_custom_call.1} parent=1 // pred_fallthru
      _
    %40 = vsyncpa [#allocation3], 1
    %41 = vsyncpa [#allocation4], 1

</llo_original>
